<compile_context>
chip_gen: v7x
topology: tpu7x:2x2x1
jax: 0.10.0
libtpu: 0.0.40
codegen_flags: <defaults>
</compile_context>

<pallas_src>
import functools

import jax
import jax.numpy as jnp
import numpy as np
from jax.experimental import pallas as pl
from jax.experimental.pallas import tpu as pltpu

EPS = 1e-5
LANE = 128
SUBLANE = 8


def _round_up(x, m):
    return (x + m - 1) // m * m


def _pad2d(x, rows, cols):
    r, c = x.shape
    if r == rows and c == cols:
        return x
    return jnp.pad(x, ((0, rows - r), (0, cols - c)))


def _vmem_capacity_bytes():
    """Physical VMEM of the attached TPU generation (fallback: 128 MiB)."""
    try:
        cap = getattr(pltpu.get_tpu_info(), "vmem_capacity_bytes", None)
        if cap:
            return int(cap)
    except Exception:
        pass
    return 128 << 20


# ---------------------------------------------------------------------------
# Fused single-call kernel (whole problem resident in VMEM).
# ---------------------------------------------------------------------------
def _fused_kernel(d_ref, m_ref, v_ref, w1a_ref, w1b_ref, b1_ref,
                  w2_ref, b2_ref, w3_ref, b3_ref, o_ref,
                  *, true_b, mm_dtype, need_mask):
    inv_b = 1.0 / true_b
    valid = v_ref[...] if need_mask else None     # (B_pad, 1) validity column

    def bn_stats(z):
        # exact two-pass batch statistics over the valid rows (biased var)
        zv = z * valid if need_mask else z
        mu = jnp.sum(zv, axis=0, keepdims=True) * inv_b
        c = zv - mu
        if need_mask:
            c = c * valid
        var = jnp.sum(c * c, axis=0, keepdims=True) * inv_b
        return mu, jax.lax.rsqrt(var + EPS)

    z1 = jnp.dot(d_ref[...].astype(mm_dtype), w1a_ref[...],
                 preferred_element_type=jnp.float32)
    z1 = z1 + jnp.dot(m_ref[...].astype(mm_dtype), w1b_ref[...],
                      preferred_element_type=jnp.float32)
    z1 = jnp.maximum(z1 + b1_ref[...], 0.0)
    mu1, inv1 = bn_stats(z1)
    h1 = (z1 - mu1) * inv1

    z2 = jnp.dot(h1.astype(mm_dtype), w2_ref[...],
                 preferred_element_type=jnp.float32) + b2_ref[...]
    z2 = jnp.maximum(z2, 0.0)
    mu2, inv2 = bn_stats(z2)
    h2 = (z2 - mu2) * inv2

    logits = jnp.dot(h2.astype(mm_dtype), w3_ref[...],
                     preferred_element_type=jnp.float32) + b3_ref[...]
    o_ref[...] = jax.nn.sigmoid(logits)


# ---------------------------------------------------------------------------
# Tiled-path kernels.
# ---------------------------------------------------------------------------
def _build_hidden_kernel(first_layer, mm_dtype, z_dtype, need_mask):
    """relu(matmul + bias) on one batch tile; per-group BN sum / sum-of-squares
    accumulated into revisited (1, 1, H) output blocks (init at tile 0)."""

    def _accumulate(z, s_ref, q_ref):
        @pl.when(pl.program_id(1) == 0)
        def _():
            s_ref[...] = jnp.zeros_like(s_ref)
            q_ref[...] = jnp.zeros_like(q_ref)

        s_ref[...] += jnp.sum(z, axis=0, keepdims=True)[None]
        q_ref[...] += jnp.sum(z * z, axis=0, keepdims=True)[None]

    if first_layer:
        # inputs: data tile, mask tile, valid col, W1[:dim], W1[dim:], b1
        def kernel(d_ref, m_ref, v_ref, wa_ref, wb_ref, b_ref,
                   z_ref, s_ref, q_ref):
            z = (jnp.dot(d_ref[...].astype(mm_dtype), wa_ref[...],
                         preferred_element_type=jnp.float32)
                 + jnp.dot(m_ref[...].astype(mm_dtype), wb_ref[...],
                           preferred_element_type=jnp.float32)
                 + b_ref[...])
            z = jnp.maximum(z, 0.0)
            if need_mask:
                z = z * v_ref[...]          # zero padded rows (stats + store)
            z_ref[...] = z.astype(z_dtype)
            _accumulate(z, s_ref, q_ref)
    else:
        # inputs: previous pre-BN activations, valid col, mean, inv_std, W, b
        def kernel(zin_ref, v_ref, mu_ref, inv_ref, w_ref, b_ref,
                   z_ref, s_ref, q_ref):
            h = (zin_ref[...].astype(jnp.float32) - mu_ref[...]) * inv_ref[...]
            z = jnp.dot(h.astype(mm_dtype), w_ref[...],
                        preferred_element_type=jnp.float32) + b_ref[...]
            z = jnp.maximum(z, 0.0)
            if need_mask:
                z = z * v_ref[...]
            z_ref[...] = z.astype(z_dtype)
            _accumulate(z, s_ref, q_ref)

    return kernel


def _output_kernel(zin_ref, mu_ref, inv_ref, w_ref, b_ref, o_ref, *, mm_dtype):
    h = (zin_ref[...].astype(jnp.float32) - mu_ref[...]) * inv_ref[...]
    logits = jnp.dot(h.astype(mm_dtype), w_ref[...],
                     preferred_element_type=jnp.float32) + b_ref[...]
    o_ref[...] = jax.nn.sigmoid(logits)


# ---------------------------------------------------------------------------
# Wrapper
# ---------------------------------------------------------------------------
def imputation_forward(data, mask, params, *, tile_b=None, groups=None,
                       matmul_dtype=jnp.float32, force_tiled=False):
    """data, mask: (B, dim) float32.  Returns G_prob: (B, dim) float32."""
    w1, b1, w2, b2, w3, b3 = params
    B, dim = data.shape
    h1 = w1.shape[1]
    h2 = w2.shape[1]
    assert w1.shape[0] == 2 * dim and w3.shape[1] == dim

    f32 = jnp.float32
    mm_dt = jnp.dtype(matmul_dtype)

    # lane-dense padded feature dims (padded rows/cols are zero => no effect)
    d_p = _round_up(dim, LANE)
    h1_p = _round_up(h1, LANE)
    h2_p = _round_up(h2, LANE)

    vmem_cap = _vmem_capacity_bytes()              # 64 MiB v7x, 128 MiB v5e/v6e
    vmem_limit = min(vmem_cap * 3 // 4, 100 << 20)

    # W1 split at trace time: no host-side concat of [data|mask].
    w1a = _pad2d(w1[:dim].astype(f32), d_p, h1_p).astype(mm_dt)
    w1b = _pad2d(w1[dim:].astype(f32), d_p, h1_p).astype(mm_dt)
    b1_p = _pad2d(b1.reshape(1, -1).astype(f32), 1, h1_p)
    w2_p = _pad2d(w2.astype(f32), h1_p, h2_p).astype(mm_dt)
    b2_p = _pad2d(b2.reshape(1, -1).astype(f32), 1, h2_p)
    w3_p = _pad2d(w3.astype(f32), h2_p, d_p).astype(mm_dt)
    b3_p = _pad2d(b3.reshape(1, -1).astype(f32), 1, d_p)
    weight_bytes = (mm_dt.itemsize * (2 * d_p * h1_p + h1_p * h2_p + h2_p * d_p)
                    + 4 * (h1_p + h2_p + d_p))
    total_flops = 2 * B * (2 * d_p * h1_p + h1_p * h2_p + h2_p * d_p)

    # ------------------------- fused single-call path -----------------------
    b_f = _round_up(B, SUBLANE)
    fused_bytes = weight_bytes + 4 * b_f * (3 * d_p + 1 + 3 * max(h1_p, h2_p))
    if not force_tiled and fused_bytes <= vmem_limit // 2:
        data_p = _pad2d(data.astype(f32), b_f, d_p)
        mask_p = _pad2d(mask.astype(f32), b_f, d_p)
        valid = (jnp.arange(b_f) < B).astype(f32).reshape(b_f, 1)
        kern = functools.partial(_fused_kernel, true_b=B, mm_dtype=mm_dt,
                                 need_mask=(b_f != B))
        out_p = pl.pallas_call(
            kern,
            out_shape=jax.ShapeDtypeStruct((b_f, d_p), f32),
            compiler_params=pltpu.CompilerParams(vmem_limit_bytes=vmem_limit),
            cost_estimate=pl.CostEstimate(
                flops=int(total_flops),
                transcendentals=int(b_f * d_p + h1_p + h2_p),
                bytes_accessed=int(weight_bytes + 4 * b_f * (3 * d_p + 1))),
        )(data_p, mask_p, valid, w1a, w1b, b1_p, w2_p, b2_p, w3_p, b3_p)
        return out_p[:B, :dim]

    # ----------------------------- tiled path -------------------------------
    # batch tile: as large as the (generation-aware) VMEM budget allows
    if tile_b is None:
        tile_b = 512 if vmem_cap >= (96 << 20) else 256
        tile_b = min(tile_b, _round_up(B, SUBLANE))
    tile_b = _round_up(tile_b, LANE if tile_b >= LANE else SUBLANE)
    z_dtype = mm_dt                     # bf16 intermediates when bf16 matmul
    if z_dtype.itemsize < 4:            # keep sublane packing aligned
        tile_b = _round_up(tile_b, SUBLANE * (4 // z_dtype.itemsize))

    n_tiles = -(-B // tile_b)
    if groups is None:
        # Per-group partial sums let v7x's two TensorCores split the batch
        # loop ("parallel" outer axis).  Auto-enable only when the split does
        # not create a wasted padding tile (harmless, just useless, on 1-TC
        # v5e/v6e).
        groups = 2 if n_tiles >= 2 and (n_tiles % 2 == 0 or n_tiles >= 8) else 1
    groups = max(1, min(int(groups), n_tiles))
    tpg = -(-n_tiles // groups)          # batch tiles per group
    b_p = groups * tpg * tile_b
    need_mask = (b_p != B)

    data_p = _pad2d(data.astype(f32), b_p, d_p)
    mask_p = _pad2d(mask.astype(f32), b_p, d_p)
    valid = (jnp.arange(b_p) < B).astype(f32).reshape(b_p, 1)

    def row_spec(cols):
        return pl.BlockSpec((tile_b, cols), lambda g, i: (g * tpg + i, 0))

    valid_spec = pl.BlockSpec((tile_b, 1), lambda g, i: (g * tpg + i, 0))

    def const_spec(rows, cols):
        # constant index_map => weights/biases stay VMEM-resident (no re-DMA)
        return pl.BlockSpec((rows, cols), lambda g, i: (0, 0))

    def acc_spec(cols):
        return pl.BlockSpec((1, 1, cols), lambda g, i: (g, 0, 0))

    cp_acc = pltpu.CompilerParams(
        dimension_semantics=("parallel", "arbitrary"),
        vmem_limit_bytes=vmem_limit)
    cp_par = pltpu.CompilerParams(
        dimension_semantics=("parallel", "parallel"),
        vmem_limit_bytes=vmem_limit)

    zsz = z_dtype.itemsize

    # -------- layer 1: z1 = relu([data|mask] @ W1 + b1), BN partial sums ----
    k1 = _build_hidden_kernel(True, mm_dt, z_dtype, need_mask)
    z1, s1, q1 = pl.pallas_call(
        k1,
        grid=(groups, tpg),
        in_specs=[row_spec(d_p), row_spec(d_p), valid_spec,
                  const_spec(d_p, h1_p), const_spec(d_p, h1_p),
                  const_spec(1, h1_p)],
        out_specs=(row_spec(h1_p), acc_spec(h1_p), acc_spec(h1_p)),
        out_shape=(jax.ShapeDtypeStruct((b_p, h1_p), z_dtype),
                   jax.ShapeDtypeStruct((groups, 1, h1_p), f32),
                   jax.ShapeDtypeStruct((groups, 1, h1_p), f32)),
        compiler_params=cp_acc,
        cost_estimate=pl.CostEstimate(
            flops=int(4 * b_p * d_p * h1_p), transcendentals=0,
            bytes_accessed=int(4 * (2 * b_p * d_p + b_p)
                               + 2 * mm_dt.itemsize * d_p * h1_p
                               + zsz * b_p * h1_p
                               + 4 * (2 * groups + 1) * h1_p)),
    )(data_p, mask_p, valid, w1a, w1b, b1_p)

    s1 = jnp.sum(s1, axis=0)                      # (1, h1_p)
    q1 = jnp.sum(q1, axis=0)
    mu1 = s1 / B
    # single-pass biased variance (fine in f32 for ReLU-scale activations);
    # the fused path above uses an exact two-pass form.
    var1 = jnp.maximum(q1 / B - mu1 * mu1, 0.0)
    inv1 = jax.lax.rsqrt(var1 + EPS)

    # -------- layer 2: z2 = relu(BN1(z1) @ W2 + b2), BN partial sums --------
    k2 = _build_hidden_kernel(False, mm_dt, z_dtype, need_mask)
    z2, s2, q2 = pl.pallas_call(
        k2,
        grid=(groups, tpg),
        in_specs=[row_spec(h1_p), valid_spec,
                  const_spec(1, h1_p), const_spec(1, h1_p),
                  const_spec(h1_p, h2_p), const_spec(1, h2_p)],
        out_specs=(row_spec(h2_p), acc_spec(h2_p), acc_spec(h2_p)),
        out_shape=(jax.ShapeDtypeStruct((b_p, h2_p), z_dtype),
                   jax.ShapeDtypeStruct((groups, 1, h2_p), f32),
                   jax.ShapeDtypeStruct((groups, 1, h2_p), f32)),
        compiler_params=cp_acc,
        cost_estimate=pl.CostEstimate(
            flops=int(2 * b_p * h1_p * h2_p), transcendentals=0,
            bytes_accessed=int(zsz * b_p * (h1_p + h2_p) + 4 * b_p
                               + mm_dt.itemsize * h1_p * h2_p
                               + 4 * (2 * h1_p + (2 * groups + 1) * h2_p))),
    )(z1, valid, mu1, inv1, w2_p, b2_p)

    s2 = jnp.sum(s2, axis=0)
    q2 = jnp.sum(q2, axis=0)
    mu2 = s2 / B
    var2 = jnp.maximum(q2 / B - mu2 * mu2, 0.0)
    inv2 = jax.lax.rsqrt(var2 + EPS)

    # -------- layer 3: out = sigmoid(BN2(z2) @ W3 + b3) ----------------------
    k3 = functools.partial(_output_kernel, mm_dtype=mm_dt)
    out_p = pl.pallas_call(
        k3,
        grid=(groups, tpg),
        in_specs=[row_spec(h2_p), const_spec(1, h2_p), const_spec(1, h2_p),
                  const_spec(h2_p, d_p), const_spec(1, d_p)],
        out_specs=row_spec(d_p),
        out_shape=jax.ShapeDtypeStruct((b_p, d_p), f32),
        compiler_params=cp_par,
        cost_estimate=pl.CostEstimate(
            flops=int(2 * b_p * h2_p * d_p), transcendentals=int(b_p * d_p),
            bytes_accessed=int(zsz * b_p * h2_p + 4 * b_p * d_p
                               + mm_dt.itemsize * h2_p * d_p
                               + 4 * (2 * h2_p + d_p))),
    )(z2, mu2, inv2, w3_p, b3_p)

    return out_p[:B, :dim]


# ---------------------------------------------------------------------------
# Reference + params (match the PyTorch module)
# ---------------------------------------------------------------------------
def xavier_init(key, shape):
    stddev = 1.0 / np.sqrt(shape[0] / 2.0)
    return stddev * jax.random.normal(key, shape, dtype=jnp.float32)


def make_params(key, dim, hidden_dim1, hidden_dim2):
    k1, k2, k3 = jax.random.split(key, 3)
    return (
        xavier_init(k1, (dim * 2, hidden_dim1)),
        jnp.zeros((hidden_dim1,), jnp.float32),
        xavier_init(k2, (hidden_dim1, hidden_dim2)),
        jnp.zeros((hidden_dim2,), jnp.float32),
        xavier_init(k3, (hidden_dim2, dim)),
        jnp.zeros((dim,), jnp.float32),
    )


def reference_forward(data, mask, params):
    """Pure-JAX reference matching the PyTorch forward (training-mode BN)."""
    w1, b1, w2, b2, w3, b3 = params
    x = jnp.concatenate([data, mask], axis=1).astype(jnp.float32)
    h1 = jax.nn.relu(x @ w1 + b1.reshape(1, -1))
    h1 = (h1 - h1.mean(0)) / jnp.sqrt(h1.var(0) + EPS)
    h2 = jax.nn.relu(h1 @ w2 + b2.reshape(1, -1))
    h2 = (h2 - h2.mean(0)) / jnp.sqrt(h2.var(0) + EPS)
    return jax.nn.sigmoid(h2 @ w3 + b3.reshape(1, -1))


if __name__ == "__main__":
    dim, hidden_dim1, hidden_dim2 = 16, 32, 16
    params = make_params(jax.random.PRNGKey(0), dim, hidden_dim1, hidden_dim2)

    def check(B, seed, atol, rtol, **kw):
        kd, km = jax.random.split(jax.random.PRNGKey(seed))
        data = jax.random.uniform(kd, (B, dim), dtype=jnp.float32)
        mask = (jax.random.uniform(km, (B, dim)) > 0.3).astype(jnp.float32)
        data = data * mask                # GAIN-style: missing entries zeroed
        out = jax.block_until_ready(imputation_forward(data, mask, params, **kw))
        ref = jax.block_until_ready(reference_forward(data, mask, params))
        assert out.shape == (B, dim) and out.dtype == jnp.float32
        np.testing.assert_allclose(np.asarray(out), np.asarray(ref),
                                   atol=atol, rtol=rtol)

    # 1) small batch  -> fused single-call path (z1/z2 never leave VMEM)
    check(8, 0, 1e-4, 1e-4)
    # 2) ragged batch -> fused path with valid-row masking of the BN stats
    check(13, 1, 1e-4, 1e-4)
    # 3) forced tiled 3-call path: 6 batch tiles split over 2 "parallel"
    #    groups (v7x TensorCore split), ragged last tile, revisited per-group
    #    BN partial-sum accumulators.
    check(44, 2, 1e-4, 1e-4, force_tiled=True, tile_b=8)
    # 4) bf16 MXU fast path (recommended on v6e/v7x); looser tolerance.
    check(13, 3, 5e-2, 5e-2, matmul_dtype=jnp.bfloat16)

    print("KERNEL_OK")
</pallas_src>

<mosaic_0001>
module attributes {stable_mosaic.version = 11 : i64} {
  func.func @_fused_kernel(%arg0: memref<8x128xf32, #tpu.memory_space<vmem>>, %arg1: memref<8x128xf32, #tpu.memory_space<vmem>>, %arg2: memref<8x1xf32, #tpu.memory_space<vmem>>, %arg3: memref<128x128xf32, #tpu.memory_space<vmem>>, %arg4: memref<128x128xf32, #tpu.memory_space<vmem>>, %arg5: memref<1x128xf32, #tpu.memory_space<vmem>>, %arg6: memref<128x128xf32, #tpu.memory_space<vmem>>, %arg7: memref<1x128xf32, #tpu.memory_space<vmem>>, %arg8: memref<128x128xf32, #tpu.memory_space<vmem>>, %arg9: memref<1x128xf32, #tpu.memory_space<vmem>>, %arg10: memref<8x128xf32, #tpu.memory_space<vmem>>) attributes {dimension_semantics = [], scalar_prefetch = 0 : i64, scratch_operands = 0 : i64, tpu.core_type = #tpu.core_type<tc>} {
    %c0 = arith.constant 0 : index
    %c0_0 = arith.constant 0 : index
    %0 = vector.load %arg0[%c0, %c0_0] : memref<8x128xf32, #tpu.memory_space<vmem>>, vector<8x128xf32>
    %c0_1 = arith.constant 0 : index
    %c0_2 = arith.constant 0 : index
    %1 = vector.load %arg3[%c0_1, %c0_2] : memref<128x128xf32, #tpu.memory_space<vmem>>, vector<128x128xf32>
    %cst = arith.constant dense<0.000000e+00> : vector<8x128xf32>
    %2 = tpu.matmul %0, %1, %cst {dimension_numbers = #tpu.dot_dimension_numbers<[1], [0], [0], [1], [0, 0, 1, 1], [], []>} : vector<8x128xf32>, vector<128x128xf32>, vector<8x128xf32> -> vector<8x128xf32>
    %c0_3 = arith.constant 0 : index
    %c0_4 = arith.constant 0 : index
    %3 = vector.load %arg1[%c0_3, %c0_4] : memref<8x128xf32, #tpu.memory_space<vmem>>, vector<8x128xf32>
    %c0_5 = arith.constant 0 : index
    %c0_6 = arith.constant 0 : index
    %4 = vector.load %arg4[%c0_5, %c0_6] : memref<128x128xf32, #tpu.memory_space<vmem>>, vector<128x128xf32>
    %cst_7 = arith.constant dense<0.000000e+00> : vector<8x128xf32>
    %5 = tpu.matmul %3, %4, %cst_7 {dimension_numbers = #tpu.dot_dimension_numbers<[1], [0], [0], [1], [0, 0, 1, 1], [], []>} : vector<8x128xf32>, vector<128x128xf32>, vector<8x128xf32> -> vector<8x128xf32>
    %6 = arith.addf %2, %5 : vector<8x128xf32>
    %c0_8 = arith.constant 0 : index
    %c0_9 = arith.constant 0 : index
    %7 = vector.load %arg5[%c0_8, %c0_9] : memref<1x128xf32, #tpu.memory_space<vmem>>, vector<1x128xf32>
    %8 = vector.broadcast %7 : vector<1x128xf32> to vector<8x128xf32>
    %9 = arith.addf %6, %8 : vector<8x128xf32>
    %cst_10 = arith.constant 0.000000e+00 : f32
    %10 = vector.broadcast %cst_10 : f32 to vector<8x128xf32>
    %11 = arith.maximumf %9, %10 : vector<8x128xf32>
    %cst_11 = arith.constant dense<0.000000e+00> : vector<128xf32>
    %12 = vector.multi_reduction <add>, %11, %cst_11 [0] : vector<8x128xf32> to vector<128xf32>
    %13 = vector.shape_cast %12 : vector<128xf32> to vector<1x128xf32>
    %cst_12 = arith.constant 1.250000e-01 : f32
    %14 = vector.broadcast %cst_12 : f32 to vector<1x128xf32>
    %15 = arith.mulf %13, %14 : vector<1x128xf32>
    %16 = vector.broadcast %15 : vector<1x128xf32> to vector<8x128xf32>
    %17 = arith.subf %11, %16 : vector<8x128xf32>
    %18 = arith.mulf %17, %17 : vector<8x128xf32>
    %cst_13 = arith.constant dense<0.000000e+00> : vector<128xf32>
    %19 = vector.multi_reduction <add>, %18, %cst_13 [0] : vector<8x128xf32> to vector<128xf32>
    %20 = vector.shape_cast %19 : vector<128xf32> to vector<1x128xf32>
    %cst_14 = arith.constant 1.250000e-01 : f32
    %21 = vector.broadcast %cst_14 : f32 to vector<1x128xf32>
    %22 = arith.mulf %20, %21 : vector<1x128xf32>
    %cst_15 = arith.constant 9.99999974E-6 : f32
    %23 = vector.broadcast %cst_15 : f32 to vector<1x128xf32>
    %24 = arith.addf %22, %23 : vector<1x128xf32>
    %25 = math.rsqrt %24 : vector<1x128xf32>
    %26 = vector.broadcast %15 : vector<1x128xf32> to vector<8x128xf32>
    %27 = arith.subf %11, %26 : vector<8x128xf32>
    %28 = vector.broadcast %25 : vector<1x128xf32> to vector<8x128xf32>
    %29 = arith.mulf %27, %28 : vector<8x128xf32>
    %c0_16 = arith.constant 0 : index
    %c0_17 = arith.constant 0 : index
    %30 = vector.load %arg6[%c0_16, %c0_17] : memref<128x128xf32, #tpu.memory_space<vmem>>, vector<128x128xf32>
    %cst_18 = arith.constant dense<0.000000e+00> : vector<8x128xf32>
    %31 = tpu.matmul %29, %30, %cst_18 {dimension_numbers = #tpu.dot_dimension_numbers<[1], [0], [0], [1], [0, 0, 1, 1], [], []>} : vector<8x128xf32>, vector<128x128xf32>, vector<8x128xf32> -> vector<8x128xf32>
    %c0_19 = arith.constant 0 : index
    %c0_20 = arith.constant 0 : index
    %32 = vector.load %arg7[%c0_19, %c0_20] : memref<1x128xf32, #tpu.memory_space<vmem>>, vector<1x128xf32>
    %33 = vector.broadcast %32 : vector<1x128xf32> to vector<8x128xf32>
    %34 = arith.addf %31, %33 : vector<8x128xf32>
    %cst_21 = arith.constant 0.000000e+00 : f32
    %35 = vector.broadcast %cst_21 : f32 to vector<8x128xf32>
    %36 = arith.maximumf %34, %35 : vector<8x128xf32>
    %cst_22 = arith.constant dense<0.000000e+00> : vector<128xf32>
    %37 = vector.multi_reduction <add>, %36, %cst_22 [0] : vector<8x128xf32> to vector<128xf32>
    %38 = vector.shape_cast %37 : vector<128xf32> to vector<1x128xf32>
    %cst_23 = arith.constant 1.250000e-01 : f32
    %39 = vector.broadcast %cst_23 : f32 to vector<1x128xf32>
    %40 = arith.mulf %38, %39 : vector<1x128xf32>
    %41 = vector.broadcast %40 : vector<1x128xf32> to vector<8x128xf32>
    %42 = arith.subf %36, %41 : vector<8x128xf32>
    %43 = arith.mulf %42, %42 : vector<8x128xf32>
    %cst_24 = arith.constant dense<0.000000e+00> : vector<128xf32>
    %44 = vector.multi_reduction <add>, %43, %cst_24 [0] : vector<8x128xf32> to vector<128xf32>
    %45 = vector.shape_cast %44 : vector<128xf32> to vector<1x128xf32>
    %cst_25 = arith.constant 1.250000e-01 : f32
    %46 = vector.broadcast %cst_25 : f32 to vector<1x128xf32>
    %47 = arith.mulf %45, %46 : vector<1x128xf32>
    %cst_26 = arith.constant 9.99999974E-6 : f32
    %48 = vector.broadcast %cst_26 : f32 to vector<1x128xf32>
    %49 = arith.addf %47, %48 : vector<1x128xf32>
    %50 = math.rsqrt %49 : vector<1x128xf32>
    %51 = vector.broadcast %40 : vector<1x128xf32> to vector<8x128xf32>
    %52 = arith.subf %36, %51 : vector<8x128xf32>
    %53 = vector.broadcast %50 : vector<1x128xf32> to vector<8x128xf32>
    %54 = arith.mulf %52, %53 : vector<8x128xf32>
    %c0_27 = arith.constant 0 : index
    %c0_28 = arith.constant 0 : index
    %55 = vector.load %arg8[%c0_27, %c0_28] : memref<128x128xf32, #tpu.memory_space<vmem>>, vector<128x128xf32>
    %cst_29 = arith.constant dense<0.000000e+00> : vector<8x128xf32>
    %56 = tpu.matmul %54, %55, %cst_29 {dimension_numbers = #tpu.dot_dimension_numbers<[1], [0], [0], [1], [0, 0, 1, 1], [], []>} : vector<8x128xf32>, vector<128x128xf32>, vector<8x128xf32> -> vector<8x128xf32>
    %c0_30 = arith.constant 0 : index
    %c0_31 = arith.constant 0 : index
    %57 = vector.load %arg9[%c0_30, %c0_31] : memref<1x128xf32, #tpu.memory_space<vmem>>, vector<1x128xf32>
    %58 = vector.broadcast %57 : vector<1x128xf32> to vector<8x128xf32>
    %59 = arith.addf %56, %58 : vector<8x128xf32>
    %60 = arith.negf %59 : vector<8x128xf32>
    %61 = math.exp %60 : vector<8x128xf32>
    %cst_32 = arith.constant 1.000000e+00 : f32
    %62 = vector.broadcast %cst_32 : f32 to vector<8x128xf32>
    %63 = arith.addf %62, %61 : vector<8x128xf32>
    %64 = arith.divf %62, %63 : vector<8x128xf32>
    %c0_33 = arith.constant 0 : index
    %c0_34 = arith.constant 0 : index
    %65 = vector.load %arg10[%c0_33, %c0_34] : memref<8x128xf32, #tpu.memory_space<vmem>>, vector<8x128xf32>
    tpu.vector_store %arg10[%c0_33, %c0_34], %64 {strides = array<i32>} : memref<8x128xf32, #tpu.memory_space<vmem>>, vector<8x128xf32>,
    return
  }
}

</mosaic_0001>

<llo_original>
// kernel: tpu_custom_call.1
$region0: #{tpu_custom_call.1}
  #allocation0 [shape = 'u32[]', space=smem, size = 0x4, offset = 0x4, fixed_abs, tag = 'smem constant byte address 0x4 - core index']
  #allocation1 [shape = 'u32[144,128]{1,0:T(1,128)}', space=vmem, size = 0x12000, scoped, tag = 'internal scratch']
  %s0 = inlined_call_operand.hbm [shape: f32[8,128], index: 0, kind: input, shape index: {}]
  %s1 = inlined_call_operand.hbm [shape: f32[8,128], index: 1, kind: input, shape index: {}]
  %s2 = inlined_call_operand.hbm [shape: f32[8,1], index: 2, kind: input, shape index: {}]
  %s3 = inlined_call_operand.hbm [shape: f32[128,128], index: 3, kind: input, shape index: {}]
  %s4 = inlined_call_operand.hbm [shape: f32[128,128], index: 4, kind: input, shape index: {}]
  %s5 = inlined_call_operand.hbm [shape: f32[1,128], index: 5, kind: input, shape index: {}]
  %s6 = inlined_call_operand.hbm [shape: f32[128,128], index: 6, kind: input, shape index: {}]
  %s7 = inlined_call_operand.hbm [shape: f32[1,128], index: 7, kind: input, shape index: {}]
  %s8 = inlined_call_operand.hbm [shape: f32[128,128], index: 8, kind: input, shape index: {}]
  %s9 = inlined_call_operand.hbm [shape: f32[1,128], index: 9, kind: input, shape index: {}]
  %s10 = inlined_call_operand.hbm [shape: f32[8,128], index: 10, kind: output, shape index: {}]
  %s11 = sld [smem:[#allocation0]]
  $region90: #{tpu_custom_call.1} parent=0
    _
  %s13 = ssub.s32 1, %s11
  %s14 = scalar_select 0, %s13, %s11
  $region1: #{tpu_custom_call.1} parent=0
    #allocation2 [shape = 'u8[4096]{0}', space=vmem, size = 0x1000, scoped, tag = 'input window, operand 0, single buffered']
    #allocation3 [shape = 's32[1]{0}', space=sflag, size = 0x4, scoped, tag = 'scoped memory for tpu_custom_call.1']
    #allocation4 [shape = 's32[1]{0}', space=sflag, size = 0x4, scoped, tag = 'scoped memory for tpu_custom_call.1']
    #allocation5 [shape = 'u8[4096]{0}', space=vmem, size = 0x1000, scoped, tag = 'input window, operand 1, single buffered']
    #allocation6 [shape = 's32[1]{0}', space=sflag, size = 0x4, scoped, tag = 'scoped memory for tpu_custom_call.1']
    #allocation7 [shape = 'u8[4096]{0}', space=vmem, size = 0x1000, scoped, tag = 'input window, operand 2, single buffered']
    #allocation8 [shape = 'u8[65536]{0}', space=vmem, size = 0x10000, scoped, tag = 'input window, operand 3, single buffered']
    #allocation9 [shape = 's32[1]{0}', space=sflag, size = 0x4, scoped, tag = 'scoped memory for tpu_custom_call.1']
    #allocation10 [shape = 'u8[65536]{0}', space=vmem, size = 0x10000, scoped, tag = 'input window, operand 4, single buffered']
    #allocation11 [shape = 'u8[512]{0}', space=vmem, size = 0x400, scoped, tag = 'input window, operand 5, single buffered']
    #allocation12 [shape = 's32[1]{0}', space=sflag, size = 0x4, scoped, tag = 'scoped memory for tpu_custom_call.1']
    #allocation13 [shape = 'u8[65536]{0}', space=vmem, size = 0x10000, scoped, tag = 'input window, operand 6, single buffered']
    #allocation14 [shape = 'u8[512]{0}', space=vmem, size = 0x400, scoped, tag = 'input window, operand 7, single buffered']
    #allocation15 [shape = 's32[1]{0}', space=sflag, size = 0x4, scoped, tag = 'scoped memory for tpu_custom_call.1']
    #allocation16 [shape = 'u8[65536]{0}', space=vmem, size = 0x10000, scoped, tag = 'input window, operand 8, single buffered']
    #allocation17 [shape = 'u8[512]{0}', space=vmem, size = 0x400, scoped, tag = 'input window, operand 9, single buffered']
    #allocation18 [shape = 's32[1]{0}', space=sflag, size = 0x4, scoped, tag = 'scoped memory for tpu_custom_call.1']
    #allocation19 [shape = 'u8[4096]{0}', space=vmem, size = 0x1000, scoped, tag = 'output window, operand 0, single buffered']
    %15 = vsyncpa [#allocation3], 0
    %16 = vsyncpa [#allocation6], 0
    %17 = vsyncpa [#allocation9], 0
    %18 = vsyncpa [#allocation12], 0
    %19 = vsyncpa [#allocation15], 0
    %20 = vsyncpa [#allocation18], 0
    %21 = vsyncpa [#allocation4], 0
    // Predicated region
    $region2: #{tpu_custom_call.1} parent=1 // pred_check
      _
    $region3: #{tpu_custom_call.1} parent=1 // pred_check_branch
      %23 = sbr.rel (0) target = $region5
    $region4: #{tpu_custom_call.1} parent=1 // pred_region
      %s25 = ssub.s32 128, 128
      %26 = vsyncadd [#allocation3], %s25
      %s28 = sshll.u32 [#allocation2], 4
      %s29 = int_to_ptr.vmem [resolvable:$true] %s28
      %31 = dma.hbm_to_vmem [thread:$0]  %s0, 128, %s29, [#allocation3]
    $region5: #{tpu_custom_call.1} parent=1 // pred_fallthru
      _
    // Predicated region
    $region6: #{tpu_custom_call.1} parent=1 // pred_check
      _
    $region7: #{tpu_custom_call.1} parent=1 // pred_check_branch
      %33 = sbr.rel (0) target = $region9
    $region8: #{tpu_custom_call.1} parent=1 // pred_region
      %s35 = ssub.s32 128, 128
      %36 = vsyncadd [#allocation6], %s35
      %s38 = sshll.u32 [#allocation5], 4
      %s39 = int_to_ptr.vmem [resolvable:$true] %s38
      %41 = dma.hbm_to_vmem [thread:$0]  %s1, 128, %s39, [#allocation6]
    $region9: #{tpu_custom_call.1} parent=1 // pred_fallthru
      _
    // Predicated region
    $region10: #{tpu_custom_call.1} parent=1 // pred_check
      _
    $region11: #{tpu_custom_call.1} parent=1 // pred_check_branch
      %43 = sbr.rel (0) target = $region13
    $region12: #{tpu_custom_call.1} parent=1 // pred_region
      %s45 = ssub.s32 128, 128
      %46 = vsyncadd [#allocation6], %s45
      %s48 = sshll.u32 [#allocation7], 4
      %s49 = int_to_ptr.vmem [resolvable:$true] %s48
      %51 = dma.hbm_to_vmem [thread:$0]  %s2, 128, %s49, [#allocation6]
    $region13: #{tpu_custom_call.1} parent=1 // pred_fallthru
      _
    // Predicated region
    $region14: #{tpu_custom_call.1} parent=1 // pred_check
      _
    $region15: #{tpu_custom_call.1} parent=1 // pred_check_branch
      %53 = sbr.rel (0) target = $region17
    $region16: #{tpu_custom_call.1} parent=1 // pred_region
      %s55 = ssub.s32 2048, 2048
      %56 = vsyncadd [#allocation9], %s55
      %s57 = sshll.u32 [#allocation8], 4
      %s58 = int_to_ptr.vmem [resolvable:$true] %s57
      %63 = dma.hbm_to_vmem [thread:$0]  %s3, 2048, %s58, [#allocation9], 128, 128, 8
    $region17: #{tpu_custom_call.1} parent=1 // pred_fallthru
      _
    // Predicated region
    $region18: #{tpu_custom_call.1} parent=1 // pred_check
      _
    $region19: #{tpu_custom_call.1} parent=1 // pred_check_branch
      %65 = sbr.rel (0) target = $region21
    $region20: #{tpu_custom_call.1} parent=1 // pred_region
      %s67 = ssub.s32 2048, 2048
      %68 = vsyncadd [#allocation9], %s67
      %s69 = sshll.u32 [#allocation10], 4
      %s70 = int_to_ptr.vmem [resolvable:$true] %s69
      %75 = dma.hbm_to_vmem [thread:$0]  %s4, 2048, %s70, [#allocation9], 128, 128, 8
    $region21: #{tpu_custom_call.1} parent=1 // pred_fallthru
      _
    // Predicated region
    $region22: #{tpu_custom_call.1} parent=1 // pred_check
      _
    $region23: #{tpu_custom_call.1} parent=1 // pred_check_branch
      %77 = sbr.rel (0) target = $region25
    $region24: #{tpu_custom_call.1} parent=1 // pred_region
      %s79 = ssub.s32 16, 16
      %80 = vsyncadd [#allocation12], %s79
      %s82 = sshll.u32 [#allocation11], 4
      %s83 = int_to_ptr.vmem [resolvable:$true] %s82
      %85 = dma.hbm_to_vmem [thread:$0]  %s5, 16, %s83, [#allocation12]
    $region25: #{tpu_custom_call.1} parent=1 // pred_fallthru
      _
    // Predicated region
    $region26: #{tpu_custom_call.1} parent=1 // pred_check
      _
    $region27: #{tpu_custom_call.1} parent=1 // pred_check_branch
      %87 = sbr.rel (0) target = $region29
    $region28: #{tpu_custom_call.1} parent=1 // pred_region
      %s89 = ssub.s32 2048, 2048
      %90 = vsyncadd [#allocation12], %s89
      %s91 = sshll.u32 [#allocation13], 4
      %s92 = int_to_ptr.vmem [resolvable:$true] %s91
      %97 = dma.hbm_to_vmem [thread:$0]  %s6, 2048, %s92, [#allocation12], 128, 128, 8
    $region29: #{tpu_custom_call.1} parent=1 // pred_fallthru
      _
    // Predicated region
    $region30: #{tpu_custom_call.1} parent=1 // pred_check
      _
    $region31: #{tpu_custom_call.1} parent=1 // pred_check_branch
      %99 = sbr.rel (0) target = $region33
    $region32: #{tpu_custom_call.1} parent=1 // pred_region
      %s101 = ssub.s32 16, 16
      %102 = vsyncadd [#allocation15], %s101
      %s104 = sshll.u32 [#allocation14], 4
      %s105 = int_to_ptr.vmem [resolvable:$true] %s104
      %107 = dma.hbm_to_vmem [thread:$0]  %s7, 16, %s105, [#allocation15]
    $region33: #{tpu_custom_call.1} parent=1 // pred_fallthru
      _
    // Predicated region
    $region34: #{tpu_custom_call.1} parent=1 // pred_check
      _
    $region35: #{tpu_custom_call.1} parent=1 // pred_check_branch
      %109 = sbr.rel (0) target = $region37
    $region36: #{tpu_custom_call.1} parent=1 // pred_region
      %s111 = ssub.s32 2048, 2048
      %112 = vsyncadd [#allocation15], %s111
      %s113 = sshll.u32 [#allocation16], 4
      %s114 = int_to_ptr.vmem [resolvable:$true] %s113
      %119 = dma.hbm_to_vmem [thread:$0]  %s8, 2048, %s114, [#allocation15], 128, 128, 8
    $region37: #{tpu_custom_call.1} parent=1 // pred_fallthru
      _
    // Predicated region
    $region38: #{tpu_custom_call.1} parent=1 // pred_check
      _
    $region39: #{tpu_custom_call.1} parent=1 // pred_check_branch
      %121 = sbr.rel (0) target = $region41
    $region40: #{tpu_custom_call.1} parent=1 // pred_region
      %s123 = ssub.s32 16, 16
      %124 = vsyncadd [#allocation18], %s123
      %s126 = sshll.u32 [#allocation17], 4
      %s127 = int_to_ptr.vmem [resolvable:$true] %s126
      %129 = dma.hbm_to_vmem [thread:$0]  %s9, 16, %s127, [#allocation18]
    $region41: #{tpu_custom_call.1} parent=1 // pred_fallthru
      _
    // Predicated region
    $region42: #{tpu_custom_call.1} parent=1 // pred_check
      _
    $region43: #{tpu_custom_call.1} parent=1 // pred_check_branch
      %131 = sbr.rel (0) target = $region45
    $region44: #{tpu_custom_call.1} parent=1 // pred_region
      %132 = dma.done [#allocation3], 128
    $region45: #{tpu_custom_call.1} parent=1 // pred_fallthru
      _
    // Predicated region
    $region46: #{tpu_custom_call.1} parent=1 // pred_check
      _
    $region47: #{tpu_custom_call.1} parent=1 // pred_check_branch
      %134 = sbr.rel (0) target = $region49
    $region48: #{tpu_custom_call.1} parent=1 // pred_region
      %135 = dma.done [#allocation6], 128
    $region49: #{tpu_custom_call.1} parent=1 // pred_fallthru
      _
    // Predicated region
    $region50: #{tpu_custom_call.1} parent=1 // pred_check
      _
    $region51: #{tpu_custom_call.1} parent=1 // pred_check_branch
      %137 = sbr.rel (0) target = $region53
    $region52: #{tpu_custom_call.1} parent=1 // pred_region
      %138 = dma.done [#allocation6], 128
    $region53: #{tpu_custom_call.1} parent=1 // pred_fallthru
      _
    // Predicated region
    $region54: #{tpu_custom_call.1} parent=1 // pred_check
      _
    $region55: #{tpu_custom_call.1} parent=1 // pred_check_branch
      %140 = sbr.rel (0) target = $region57
    $region56: #{tpu_custom_call.1} parent=1 // pred_region
      %141 = dma.done [#allocation9], 2048
    $region57: #{tpu_custom_call.1} parent=1 // pred_fallthru
      _
    // Predicated region
    $region58: #{tpu_custom_call.1} parent=1 // pred_check
      _
    $region59: #{tpu_custom_call.1} parent=1 // pred_check_branch
      %143 = sbr.rel (0) target = $region61
    $region60: #{tpu_custom_call.1} parent=1 // pred_region
      %144 = dma.done [#allocation9], 2048
    $region61: #{tpu_custom_call.1} parent=1 // pred_fallthru
      _
    // Predicated region
    $region62: #{tpu_custom_call.1} parent=1 // pred_check
      _
    $region63: #{tpu_custom_call.1} parent=1 // pred_check_branch
      %146 = sbr.rel (0) target = $region65
    $region64: #{tpu_custom_call.1} parent=1 // pred_region
      %147 = dma.done [#allocation12], 16
    $region65: #{tpu_custom_call.1} parent=1 // pred_fallthru
      _
    // Predicated region
    $region66: #{tpu_custom_call.1} parent=1 // pred_check
      _
    $region67: #{tpu_custom_call.1} parent=1 // pred_check_branch
      %149 = sbr.rel (0) target = $region69
    $region68: #{tpu_custom_call.1} parent=1 // pred_region
      %150 = dma.done [#allocation12], 2048
    $region69: #{tpu_custom_call.1} parent=1 // pred_fallthru
      _
    // Predicated region
    $region70: #{tpu_custom_call.1} parent=1 // pred_check
      _
    $region71: #{tpu_custom_call.1} parent=1 // pred_check_branch
      %152 = sbr.rel (0) target = $region73
    $region72: #{tpu_custom_call.1} parent=1 // pred_region
      %153 = dma.done [#allocation15], 16
    $region73: #{tpu_custom_call.1} parent=1 // pred_fallthru
      _
    // Predicated region
    $region74: #{tpu_custom_call.1} parent=1 // pred_check
      _
    $region75: #{tpu_custom_call.1} parent=1 // pred_check_branch
      %155 = sbr.rel (0) target = $region77
    $region76: #{tpu_custom_call.1} parent=1 // pred_region
      %156 = dma.done [#allocation15], 2048
    $region77: #{tpu_custom_call.1} parent=1 // pred_fallthru
      _
    // Predicated region
    $region78: #{tpu_custom_call.1} parent=1 // pred_check
      _
    $region79: #{tpu_custom_call.1} parent=1 // pred_check_branch
      %158 = sbr.rel (0) target = $region81
    $region80: #{tpu_custom_call.1} parent=1 // pred_region
      %159 = dma.done [#allocation18], 16
    $region81: #{tpu_custom_call.1} parent=1 // pred_fallthru
      _
    %v160 = vld [vmem:[#allocation2] sm:$0xff]
    %v161 = vld [vmem:[#allocation8] sm:$0xff]
    %v162 = vld [vmem:[#allocation8 + $0x8] sm:$0xff]
    %v163 = vld [vmem:[#allocation8 + $0x10] sm:$0xff]
    %v164 = vld [vmem:[#allocation8 + $0x18] sm:$0xff]
    %v165 = vld [vmem:[#allocation8 + $0x20] sm:$0xff]
    %v166 = vld [vmem:[#allocation8 + $0x28] sm:$0xff]
    %v167 = vld [vmem:[#allocation8 + $0x30] sm:$0xff]
    %v168 = vld [vmem:[#allocation8 + $0x38] sm:$0xff]
    %v169 = vld [vmem:[#allocation8 + $0x40] sm:$0xff]
    %v170 = vld [vmem:[#allocation8 + $0x48] sm:$0xff]
    %v171 = vld [vmem:[#allocation8 + $0x50] sm:$0xff]
    %v172 = vld [vmem:[#allocation8 + $0x58] sm:$0xff]
    %v173 = vld [vmem:[#allocation8 + $0x60] sm:$0xff]
    %v174 = vld [vmem:[#allocation8 + $0x68] sm:$0xff]
    %v175 = vld [vmem:[#allocation8 + $0x70] sm:$0xff]
    %v176 = vld [vmem:[#allocation8 + $0x78] sm:$0xff]
    %v177 = vld [vmem:[#allocation5] sm:$0xff]
    %v178 = vld [vmem:[#allocation10] sm:$0xff]
    %v179 = vld [vmem:[#allocation10 + $0x8] sm:$0xff]
    %v180 = vld [vmem:[#allocation10 + $0x10] sm:$0xff]
    %v181 = vld [vmem:[#allocation10 + $0x18] sm:$0xff]
    %v182 = vld [vmem:[#allocation10 + $0x20] sm:$0xff]
    %v183 = vld [vmem:[#allocation10 + $0x28] sm:$0xff]
    %v184 = vld [vmem:[#allocation10 + $0x30] sm:$0xff]
    %v185 = vld [vmem:[#allocation10 + $0x38] sm:$0xff]
    %v186 = vld [vmem:[#allocation10 + $0x40] sm:$0xff]
    %v187 = vld [vmem:[#allocation10 + $0x48] sm:$0xff]
    %v188 = vld [vmem:[#allocation10 + $0x50] sm:$0xff]
    %v189 = vld [vmem:[#allocation10 + $0x58] sm:$0xff]
    %v190 = vld [vmem:[#allocation10 + $0x60] sm:$0xff]
    %v191 = vld [vmem:[#allocation10 + $0x68] sm:$0xff]
    %v192 = vld [vmem:[#allocation10 + $0x70] sm:$0xff]
    %v193 = vld [vmem:[#allocation10 + $0x78] sm:$0xff]
    %194 = vmatprep.subr.mxu0 0.0
    %195 = vmatpush1.msra.mxu0 %v178
    %196 = vmatprep.subr.mxu0 0.0
    %197 = vmatpush1.msra.mxu0 %v179
    %198 = vmatprep.subr.mxu0 0.0
    %199 = vmatpush1.msra.mxu0 %v180
    %200 = vmatprep.subr.mxu0 0.0
    %201 = vmatpush1.msra.mxu0 %v181
    %202 = vmatprep.subr.mxu0 0.0
    %203 = vmatpush1.msra.mxu0 %v182
    %204 = vmatprep.subr.mxu0 0.0
    %205 = vmatpush1.msra.mxu0 %v183
    %206 = vmatprep.subr.mxu0 0.0
    %207 = vmatpush1.msra.mxu0 %v184
    %208 = vmatprep.subr.mxu0 0.0
    %209 = vmatpush1.msra.mxu0 %v185
    %210 = vmatprep.subr.mxu0 0.0
    %211 = vmatpush1.msra.mxu0 %v186
    %212 = vmatprep.subr.mxu0 0.0
    %213 = vmatpush1.msra.mxu0 %v187
    %214 = vmatprep.subr.mxu0 0.0
    %215 = vmatpush1.msra.mxu0 %v188
    %216 = vmatprep.subr.mxu0 0.0
    %217 = vmatpush1.msra.mxu0 %v189
    %218 = vmatprep.subr.mxu0 0.0
    %219 = vmatpush1.msra.mxu0 %v190
    %220 = vmatprep.subr.mxu0 0.0
    %221 = vmatpush1.msra.mxu0 %v191
    %222 = vmatprep.subr.mxu0 0.0
    %223 = vmatpush1.msra.mxu0 %v192
    %224 = vmatprep.subr.mxu0 0.0
    %225 = vmatpush1.msra.mxu0 %v193
    %226 = vmatprep.subr.mxu0 0.0
    %227 = vmatpush1.msra.mxu0 0.0
    %228 = vmatprep.subr.mxu0 0.0
    %229 = vmatpush1.msra.mxu0 0.0
    %230 = vmatprep.subr.mxu0 0.0
    %231 = vmatpush1.msra.mxu0 0.0
    %232 = vmatprep.subr.mxu0 0.0
    %233 = vmatpush1.msra.mxu0 0.0
    %234 = vmatprep.subr.mxu0 0.0
    %235 = vmatpush1.msra.mxu0 0.0
    %236 = vmatprep.subr.mxu0 0.0
    %237 = vmatpush1.msra.mxu0 0.0
    %238 = vmatprep.subr.mxu0 0.0
    %239 = vmatpush1.msra.mxu0 0.0
    %240 = vmatprep.subr.mxu0 0.0
    %241 = vmatpush1.msra.mxu0 0.0
    %242 = vmatprep.subr.mxu0 0.0
    %243 = vmatpush1.msra.mxu0 0.0
    %244 = vmatprep.subr.mxu0 0.0
    %245 = vmatpush1.msra.mxu0 0.0
    %246 = vmatprep.subr.mxu0 0.0
    %247 = vmatpush1.msra.mxu0 0.0
    %248 = vmatprep.subr.mxu0 0.0
    %249 = vmatpush1.msra.mxu0 0.0
    %250 = vmatprep.subr.mxu0 0.0
    %251 = vmatpush1.msra.mxu0 0.0
    %252 = vmatprep.subr.mxu0 0.0
    %253 = vmatpush1.msra.mxu0 0.0
    %254 = vmatprep.subr.mxu0 0.0
    %255 = vmatpush1.msra.mxu0 0.0
    %256 = vmatprep.subr.mxu0 0.0
    %257 = vmatpush1.msra.mxu0 0.0
    %258 = vmatprep.mubr.f32.mxu0 0.0
    %259 = vmatmul.mubr.f32.gmra.mrb[0].mxu0 %v177
    %v260 = vpop.f32.mrb[0].mxu0
    %v261 = vadd.f32 0.0, %v260
    %v262 = vpop.f32.mrb[0].mxu0
    %263 = vdwg.mxu0
    %264 = vmatprep.subr.mxu0 0.0
    %265 = vmatpush1.msra.mxu0 %v161
    %266 = vmatprep.subr.mxu0 0.0
    %267 = vmatpush1.msra.mxu0 %v162
    %268 = vmatprep.subr.mxu0 0.0
    %269 = vmatpush1.msra.mxu0 %v163
    %270 = vmatprep.subr.mxu0 0.0
    %271 = vmatpush1.msra.mxu0 %v164
    %272 = vmatprep.subr.mxu0 0.0
    %273 = vmatpush1.msra.mxu0 %v165
    %274 = vmatprep.subr.mxu0 0.0
    %275 = vmatpush1.msra.mxu0 %v166
    %276 = vmatprep.subr.mxu0 0.0
    %277 = vmatpush1.msra.mxu0 %v167
    %278 = vmatprep.subr.mxu0 0.0
    %279 = vmatpush1.msra.mxu0 %v168
    %280 = vmatprep.subr.mxu0 0.0
    %281 = vmatpush1.msra.mxu0 %v169
    %282 = vmatprep.subr.mxu0 0.0
    %283 = vmatpush1.msra.mxu0 %v170
    %284 = vmatprep.subr.mxu0 0.0
    %285 = vmatpush1.msra.mxu0 %v171
    %286 = vmatprep.subr.mxu0 0.0
    %287 = vmatpush1.msra.mxu0 %v172
    %288 = vmatprep.subr.mxu0 0.0
    %289 = vmatpush1.msra.mxu0 %v173
    %290 = vmatprep.subr.mxu0 0.0
    %291 = vmatpush1.msra.mxu0 %v174
    %292 = vmatprep.subr.mxu0 0.0
    %293 = vmatpush1.msra.mxu0 %v175
    %294 = vmatprep.subr.mxu0 0.0
    %295 = vmatpush1.msra.mxu0 %v176
    %296 = vmatprep.subr.mxu0 0.0
    %297 = vmatpush1.msra.mxu0 0.0
    %298 = vmatprep.subr.mxu0 0.0
    %299 = vmatpush1.msra.mxu0 0.0
    %300 = vmatprep.subr.mxu0 0.0
    %301 = vmatpush1.msra.mxu0 0.0
    %302 = vmatprep.subr.mxu0 0.0
    %303 = vmatpush1.msra.mxu0 0.0
    %304 = vmatprep.subr.mxu0 0.0
    %305 = vmatpush1.msra.mxu0 0.0
    %306 = vmatprep.subr.mxu0 0.0
    %307 = vmatpush1.msra.mxu0 0.0
    %308 = vmatprep.subr.mxu0 0.0
    %309 = vmatpush1.msra.mxu0 0.0
    %310 = vmatprep.subr.mxu0 0.0
    %311 = vmatpush1.msra.mxu0 0.0
    %312 = vmatprep.subr.mxu0 0.0
    %313 = vmatpush1.msra.mxu0 0.0
    %314 = vmatprep.subr.mxu0 0.0
    %315 = vmatpush1.msra.mxu0 0.0
    %316 = vmatprep.subr.mxu0 0.0
    %317 = vmatpush1.msra.mxu0 0.0
    %318 = vmatprep.subr.mxu0 0.0
    %319 = vmatpush1.msra.mxu0 0.0
    %320 = vmatprep.subr.mxu0 0.0
    %321 = vmatpush1.msra.mxu0 0.0
    %322 = vmatprep.subr.mxu0 0.0
    %323 = vmatpush1.msra.mxu0 0.0
    %324 = vmatprep.subr.mxu0 0.0
    %325 = vmatpush1.msra.mxu0 0.0
    %326 = vmatprep.subr.mxu0 0.0
    %327 = vmatpush1.msra.mxu0 0.0
    %328 = vmatprep.mubr.f32.mxu0 0.0
    %329 = vmatmul.mubr.f32.gmra.mrb[0].mxu0 %v160
    %v330 = vpop.f32.mrb[0].mxu0
    %v331 = vadd.f32 %v261, %v330
    %v332 = vpop.f32.mrb[0].mxu0
    %333 = vdwg.mxu0
    %v334 = vld [vmem:[#allocation11] sm:$0x1]
    %v336 = vlaneseq
    %v337 = vshrl.u32 %v336, 7
    %v338 = vsub.s32 0, %v337
    %v339 = vrot.slane %v334, %v338
    %v341 = vadd.f32 %v331, %v339
    %v342 = vmax.f32 %v341, 0.0
    %v343 = vrot.slane %v342, 4
    %v344 = vadd.f32 %v342, %v343
    %v345 = vrot.slane %v344, 2
    %v346 = vadd.f32 %v344, %v345
    %v347 = vrot.slane %v346, 1
    %v348 = vadd.f32 %v346, %v347
    %v349 = vmul.f32 %v348, 0.125
    %v350 = vsub.f32 %v342, %v349
    %v351 = vmul.f32 %v350, %v350
    %v352 = vrot.slane %v351, 4
    %v353 = vadd.f32 %v351, %v352
    %v354 = vrot.slane %v353, 2
    %v355 = vadd.f32 %v353, %v354
    %v356 = vrot.slane %v355, 1
    %v357 = vadd.f32 %v355, %v356
    %v358 = vmul.f32 %v357, 0.125
    %v359 = vadd.f32 %v358, 1e-05
    %v360 = vrsqrt.pop %v359
    %v361 = vmul.f32 %v350, %v360
    %v362 = vld [vmem:[#allocation13] sm:$0xff]
    %v363 = vld [vmem:[#allocation13 + $0x8] sm:$0xff]
    %v364 = vld [vmem:[#allocation13 + $0x10] sm:$0xff]
    %v365 = vld [vmem:[#allocation13 + $0x18] sm:$0xff]
    %v366 = vld [vmem:[#allocation13 + $0x20] sm:$0xff]
    %v367 = vld [vmem:[#allocation13 + $0x28] sm:$0xff]
    %v368 = vld [vmem:[#allocation13 + $0x30] sm:$0xff]
    %v369 = vld [vmem:[#allocation13 + $0x38] sm:$0xff]
    %v370 = vld [vmem:[#allocation13 + $0x40] sm:$0xff]
    %v371 = vld [vmem:[#allocation13 + $0x48] sm:$0xff]
    %v372 = vld [vmem:[#allocation13 + $0x50] sm:$0xff]
    %v373 = vld [vmem:[#allocation13 + $0x58] sm:$0xff]
    %v374 = vld [vmem:[#allocation13 + $0x60] sm:$0xff]
    %v375 = vld [vmem:[#allocation13 + $0x68] sm:$0xff]
    %v376 = vld [vmem:[#allocation13 + $0x70] sm:$0xff]
    %v377 = vld [vmem:[#allocation13 + $0x78] sm:$0xff]
    %v378 = vld [vmem:[#allocation14] sm:$0x1]
    %v380 = vlaneseq
    %v381 = vshrl.u32 %v380, 7
    %v382 = vsub.s32 0, %v381
    %v383 = vrot.slane %v378, %v382
    %385 = vmatprep.subr.mxu0 0.0
    %386 = vmatpush1.msra.mxu0 %v362
    %387 = vmatprep.subr.mxu0 0.0
    %388 = vmatpush1.msra.mxu0 %v363
    %389 = vmatprep.subr.mxu0 0.0
    %390 = vmatpush1.msra.mxu0 %v364
    %391 = vmatprep.subr.mxu0 0.0
    %392 = vmatpush1.msra.mxu0 %v365
    %393 = vmatprep.subr.mxu0 0.0
    %394 = vmatpush1.msra.mxu0 %v366
    %395 = vmatprep.subr.mxu0 0.0
    %396 = vmatpush1.msra.mxu0 %v367
    %397 = vmatprep.subr.mxu0 0.0
    %398 = vmatpush1.msra.mxu0 %v368
    %399 = vmatprep.subr.mxu0 0.0
    %400 = vmatpush1.msra.mxu0 %v369
    %401 = vmatprep.subr.mxu0 0.0
    %402 = vmatpush1.msra.mxu0 %v370
    %403 = vmatprep.subr.mxu0 0.0
    %404 = vmatpush1.msra.mxu0 %v371
    %405 = vmatprep.subr.mxu0 0.0
    %406 = vmatpush1.msra.mxu0 %v372
    %407 = vmatprep.subr.mxu0 0.0
    %408 = vmatpush1.msra.mxu0 %v373
    %409 = vmatprep.subr.mxu0 0.0
    %410 = vmatpush1.msra.mxu0 %v374
    %411 = vmatprep.subr.mxu0 0.0
    %412 = vmatpush1.msra.mxu0 %v375
    %413 = vmatprep.subr.mxu0 0.0
    %414 = vmatpush1.msra.mxu0 %v376
    %415 = vmatprep.subr.mxu0 0.0
    %416 = vmatpush1.msra.mxu0 %v377
    %417 = vmatprep.subr.mxu0 0.0
    %418 = vmatpush1.msra.mxu0 0.0
    %419 = vmatprep.subr.mxu0 0.0
    %420 = vmatpush1.msra.mxu0 0.0
    %421 = vmatprep.subr.mxu0 0.0
    %422 = vmatpush1.msra.mxu0 0.0
    %423 = vmatprep.subr.mxu0 0.0
    %424 = vmatpush1.msra.mxu0 0.0
    %425 = vmatprep.subr.mxu0 0.0
    %426 = vmatpush1.msra.mxu0 0.0
    %427 = vmatprep.subr.mxu0 0.0
    %428 = vmatpush1.msra.mxu0 0.0
    %429 = vmatprep.subr.mxu0 0.0
    %430 = vmatpush1.msra.mxu0 0.0
    %431 = vmatprep.subr.mxu0 0.0
    %432 = vmatpush1.msra.mxu0 0.0
    %433 = vmatprep.subr.mxu0 0.0
    %434 = vmatpush1.msra.mxu0 0.0
    %435 = vmatprep.subr.mxu0 0.0
    %436 = vmatpush1.msra.mxu0 0.0
    %437 = vmatprep.subr.mxu0 0.0
    %438 = vmatpush1.msra.mxu0 0.0
    %439 = vmatprep.subr.mxu0 0.0
    %440 = vmatpush1.msra.mxu0 0.0
    %441 = vmatprep.subr.mxu0 0.0
    %442 = vmatpush1.msra.mxu0 0.0
    %443 = vmatprep.subr.mxu0 0.0
    %444 = vmatpush1.msra.mxu0 0.0
    %445 = vmatprep.subr.mxu0 0.0
    %446 = vmatpush1.msra.mxu0 0.0
    %447 = vmatprep.subr.mxu0 0.0
    %448 = vmatpush1.msra.mxu0 0.0
    %449 = vmatprep.mubr.f32.mxu0 0.0
    %450 = vmatmul.mubr.f32.gmra.mrb[0].mxu0 %v361
    %v451 = vpop.f32.mrb[0].mxu0
    %v452 = vadd.f32 %v383, %v451
    %v453 = vpop.f32.mrb[0].mxu0
    %454 = vdwg.mxu0
    %v455 = vmax.f32 %v452, 0.0
    %v456 = vrot.slane %v455, 4
    %v457 = vadd.f32 %v455, %v456
    %v458 = vrot.slane %v457, 2
    %v459 = vadd.f32 %v457, %v458
    %v460 = vrot.slane %v459, 1
    %v461 = vadd.f32 %v459, %v460
    %v462 = vmul.f32 %v461, 0.125
    %v463 = vsub.f32 %v455, %v462
    %v464 = vmul.f32 %v463, %v463
    %v465 = vrot.slane %v464, 4
    %v466 = vadd.f32 %v464, %v465
    %v467 = vrot.slane %v466, 2
    %v468 = vadd.f32 %v466, %v467
    %v469 = vrot.slane %v468, 1
    %v470 = vadd.f32 %v468, %v469
    %v471 = vmul.f32 %v470, 0.125
    %v472 = vadd.f32 %v471, 1e-05
    %v473 = vrsqrt.pop %v472
    %v474 = vmul.f32 %v463, %v473
    %v475 = vld [vmem:[#allocation16] sm:$0xff]
    %v476 = vld [vmem:[#allocation16 + $0x8] sm:$0xff]
    %v477 = vld [vmem:[#allocation16 + $0x10] sm:$0xff]
    %v478 = vld [vmem:[#allocation16 + $0x18] sm:$0xff]
    %v479 = vld [vmem:[#allocation16 + $0x20] sm:$0xff]
    %v480 = vld [vmem:[#allocation16 + $0x28] sm:$0xff]
    %v481 = vld [vmem:[#allocation16 + $0x30] sm:$0xff]
    %v482 = vld [vmem:[#allocation16 + $0x38] sm:$0xff]
    %v483 = vld [vmem:[#allocation16 + $0x40] sm:$0xff]
    %v484 = vld [vmem:[#allocation16 + $0x48] sm:$0xff]
    %v485 = vld [vmem:[#allocation16 + $0x50] sm:$0xff]
    %v486 = vld [vmem:[#allocation16 + $0x58] sm:$0xff]
    %v487 = vld [vmem:[#allocation16 + $0x60] sm:$0xff]
    %v488 = vld [vmem:[#allocation16 + $0x68] sm:$0xff]
    %v489 = vld [vmem:[#allocation16 + $0x70] sm:$0xff]
    %v490 = vld [vmem:[#allocation16 + $0x78] sm:$0xff]
    %v491 = vld [vmem:[#allocation17] sm:$0x1]
    %v493 = vlaneseq
    %v494 = vshrl.u32 %v493, 7
    %v495 = vsub.s32 0, %v494
    %v496 = vrot.slane %v491, %v495
    %498 = vmatprep.subr.mxu0 0.0
    %499 = vmatpush1.msra.mxu0 %v475
    %500 = vmatprep.subr.mxu0 0.0
    %501 = vmatpush1.msra.mxu0 %v476
    %502 = vmatprep.subr.mxu0 0.0
    %503 = vmatpush1.msra.mxu0 %v477
    %504 = vmatprep.subr.mxu0 0.0
    %505 = vmatpush1.msra.mxu0 %v478
    %506 = vmatprep.subr.mxu0 0.0
    %507 = vmatpush1.msra.mxu0 %v479
    %508 = vmatprep.subr.mxu0 0.0
    %509 = vmatpush1.msra.mxu0 %v480
    %510 = vmatprep.subr.mxu0 0.0
    %511 = vmatpush1.msra.mxu0 %v481
    %512 = vmatprep.subr.mxu0 0.0
    %513 = vmatpush1.msra.mxu0 %v482
    %514 = vmatprep.subr.mxu0 0.0
    %515 = vmatpush1.msra.mxu0 %v483
    %516 = vmatprep.subr.mxu0 0.0
    %517 = vmatpush1.msra.mxu0 %v484
    %518 = vmatprep.subr.mxu0 0.0
    %519 = vmatpush1.msra.mxu0 %v485
    %520 = vmatprep.subr.mxu0 0.0
    %521 = vmatpush1.msra.mxu0 %v486
    %522 = vmatprep.subr.mxu0 0.0
    %523 = vmatpush1.msra.mxu0 %v487
    %524 = vmatprep.subr.mxu0 0.0
    %525 = vmatpush1.msra.mxu0 %v488
    %526 = vmatprep.subr.mxu0 0.0
    %527 = vmatpush1.msra.mxu0 %v489
    %528 = vmatprep.subr.mxu0 0.0
    %529 = vmatpush1.msra.mxu0 %v490
    %530 = vmatprep.subr.mxu0 0.0
    %531 = vmatpush1.msra.mxu0 0.0
    %532 = vmatprep.subr.mxu0 0.0
    %533 = vmatpush1.msra.mxu0 0.0
    %534 = vmatprep.subr.mxu0 0.0
    %535 = vmatpush1.msra.mxu0 0.0
    %536 = vmatprep.subr.mxu0 0.0
    %537 = vmatpush1.msra.mxu0 0.0
    %538 = vmatprep.subr.mxu0 0.0
    %539 = vmatpush1.msra.mxu0 0.0
    %540 = vmatprep.subr.mxu0 0.0
    %541 = vmatpush1.msra.mxu0 0.0
    %542 = vmatprep.subr.mxu0 0.0
    %543 = vmatpush1.msra.mxu0 0.0
    %544 = vmatprep.subr.mxu0 0.0
    %545 = vmatpush1.msra.mxu0 0.0
    %546 = vmatprep.subr.mxu0 0.0
    %547 = vmatpush1.msra.mxu0 0.0
    %548 = vmatprep.subr.mxu0 0.0
    %549 = vmatpush1.msra.mxu0 0.0
    %550 = vmatprep.subr.mxu0 0.0
    %551 = vmatpush1.msra.mxu0 0.0
    %552 = vmatprep.subr.mxu0 0.0
    %553 = vmatpush1.msra.mxu0 0.0
    %554 = vmatprep.subr.mxu0 0.0
    %555 = vmatpush1.msra.mxu0 0.0
    %556 = vmatprep.subr.mxu0 0.0
    %557 = vmatpush1.msra.mxu0 0.0
    %558 = vmatprep.subr.mxu0 0.0
    %559 = vmatpush1.msra.mxu0 0.0
    %560 = vmatprep.subr.mxu0 0.0
    %561 = vmatpush1.msra.mxu0 0.0
    %562 = vmatprep.mubr.f32.mxu0 0.0
    %563 = vmatmul.mubr.f32.gmra.mrb[0].mxu0 %v474
    %v564 = vpop.f32.mrb[0].mxu0
    %v565 = vadd.f32 %v496, %v564
    %v566 = vpop.f32.mrb[0].mxu0
    %567 = vdwg.mxu0
    %v568 = vxor.u32 %v565, 2147483648
    %v569 = vmul.f32 %v568, 1.442695
    %v570 = vpow.pop %v569
    %v571 = vadd.f32 %v570, 1.0
    %v572 = vrcp.pop %v571
    %v573 = vmul.f32 1.0, %v572
    %574 = vst [vmem:[#allocation19] sm:$0xff] %v573
    // Predicated region
    $region82: #{tpu_custom_call.1} parent=1 // pred_check
      _
    $region83: #{tpu_custom_call.1} parent=1 // pred_check_branch
      %576 = sbr.rel (0) target = $region85
    $region84: #{tpu_custom_call.1} parent=1 // pred_region
      %s578 = ssub.s32 128, 128
      %579 = vsyncadd [#allocation4], %s578
      %s581 = sshll.u32 [#allocation19], 4
      %s582 = int_to_ptr.vmem [resolvable:$true] %s581
      %584 = dma.vmem_to_hbm [thread:$0]  %s582, 128, %s10, [#allocation4]
    $region85: #{tpu_custom_call.1} parent=1 // pred_fallthru
      _
    // Predicated region
    $region86: #{tpu_custom_call.1} parent=1 // pred_check
      _
    $region87: #{tpu_custom_call.1} parent=1 // pred_check_branch
      %586 = sbr.rel (0) target = $region89
    $region88: #{tpu_custom_call.1} parent=1 // pred_region
      %587 = dma.done [#allocation4], 128
    $region89: #{tpu_custom_call.1} parent=1 // pred_fallthru
      _
    %588 = vsyncpa [#allocation3], 1
    %589 = vsyncpa [#allocation6], 1
    %590 = vsyncpa [#allocation9], 1
    %591 = vsyncpa [#allocation12], 1
    %592 = vsyncpa [#allocation15], 1
    %593 = vsyncpa [#allocation18], 1
    %594 = vsyncpa [#allocation4], 1

</llo_original>
